<compile_context>
chip_gen: v6e
topology: v6e:2x2x1
jax: 0.10.0
libtpu: 0.0.40
codegen_flags: <defaults>
</compile_context>

<pallas_src>
import jax
import jax.numpy as jnp
import numpy as np
from jax import lax
from jax.experimental import pallas as pl
from jax.experimental.pallas import tpu as pltpu


def _upsample_kernel(x_ref, wt_ref, sh_ref, o_ref):
    # x_ref : (1, 1, TH+2, Wp, Cin)  one input row-strip (incl. 1-row halo), W zero-padded
    # wt_ref: (C4, 9*Cin)            conv weights with BN scale folded, cols ordered (kh,kw,ci)
    # sh_ref: (C4, 1)                folded conv-bias + BN shift
    # o_ref : (1, C4, TH*W)          channel-major, lane-dense conv+BN+SiLU output strip
    _, _, thp2, wp, cin = x_ref.shape
    th, w = thp2 - 2, wp - 2
    kc = 9 * cin

    # im2col done ONCE: pack the 9 shifted (TH, W, Cin) slabs along channels,
    # then a single leading-dims merge -> (TH*W, 9*Cin).
    slabs = [x_ref[0, 0, kh:kh + th, kw:kw + w, :]
             for kh in range(3) for kw in range(3)]
    patch = jnp.concatenate(slabs, axis=-1).reshape(th * w, kc)

    # Single MXU matmul (contract over taps*Cin); pixels land in the lane dim,
    # so every downstream VPU/EUP op and the store are fully lane-dense.
    acc = lax.dot_general(
        wt_ref[...], patch,
        dimension_numbers=(((1,), (1,)), ((), ())),
        preferred_element_type=jnp.float32)          # (C4, TH*W)

    y = acc + sh_ref[...]                            # conv bias + BN(eval) folded
    # SiLU: exp and the approximate reciprocal both run on the EUP slot.
    y = y * pl.reciprocal(1.0 + jnp.exp(-y), approx=True)
    o_ref[0] = y


def _pick_block_h(H, W, C4, Cin, target_bytes=1 << 20):
    """Largest H-tile that divides H, keeps the lane-dense output block legal
    (TH*W % 128 == 0 unless TH == H), keeps per-step blocks comfortably small
    for double-buffering on v5e/v6e/v7x, and (when possible) yields >= 2
    H-tiles so the grid has enough steps to pipeline."""
    valid = [th for th in range(1, H + 1)
             if H % th == 0 and (th == H or (th * W) % 128 == 0)]
    fits = [th for th in valid
            if C4 * th * W * 4 <= target_bytes
            and (th + 2) * (W + 2) * Cin * 4 <= target_bytes]
    pool = fits if fits else valid[:1]
    multi = [th for th in pool if H // th >= 2]
    return max(multi) if multi else max(pool)


def upsample_forward(x_nchw, params, eps=1e-5, block_h=None):
    """Conv2d(in, 4*out, 3, 1, 1) -> PixelShuffle(2) -> BatchNorm2d(out) -> SiLU."""
    w, b = params["w"], params["b"]
    gamma, beta = params["gamma"], params["beta"]
    run_mean, run_var = params["running_mean"], params["running_var"]

    N, Cin, H, W = x_nchw.shape
    C4 = w.shape[0]                 # = 4 * out_dim
    Cout = C4 // 4

    TH = block_h if block_h is not None else _pick_block_h(H, W, C4, Cin)
    assert H % TH == 0 and (TH == H or (TH * W) % 128 == 0)
    nH = H // TH
    Wp = W + 2

    # Exactly one NCHW->NHWC transpose; zero-pad for the 3x3/p=1 conv; cut
    # overlapping (TH+2)-row strips (1-row halo) so each grid step's input is a
    # plain blocked index_map away and Pallas auto double-buffers it.
    x = jnp.transpose(x_nchw, (0, 2, 3, 1)).astype(jnp.float32)
    xp = jnp.pad(x, ((0, 0), (1, 1), (1, 1), (0, 0)))
    strips = jnp.stack([xp[:, h * TH:h * TH + TH + 2] for h in range(nH)],
                       axis=1)                       # (N, nH, TH+2, Wp, Cin)

    # Fold eval-mode BatchNorm into the conv. PixelShuffle is a permutation, so
    # per-out-channel BN == per-conv-channel affine with params repeated 4x:
    # BN scale folds into the weight rows, conv bias + BN shift fold into one add.
    scale = gamma / jnp.sqrt(run_var + eps)
    shift = beta - run_mean * scale
    scale4 = jnp.repeat(scale, 4)                    # (C4,)
    shift4 = jnp.repeat(shift, 4)
    # (C4, Cin, 3, 3) OIHW -> (C4, 3, 3, Cin) -> (C4, 9*Cin), cols = (kh, kw, ci)
    wt = (jnp.transpose(w, (0, 2, 3, 1)).reshape(C4, 9 * Cin)
          * scale4[:, None]).astype(jnp.float32)
    sh = (b * scale4 + shift4).reshape(C4, 1).astype(jnp.float32)
    # TODO(synk): for real channel counts cast strips/wt to bf16 (MXU-native,
    # halves input DMA) keeping preferred_element_type=f32; f32 at toy sizes.

    conv_flat = pl.pallas_call(
        _upsample_kernel,
        out_shape=jax.ShapeDtypeStruct((N, C4, H * W), jnp.float32),
        grid_spec=pltpu.PrefetchScalarGridSpec(
            num_scalar_prefetch=0,
            grid=(N, nH),
            in_specs=[
                pl.BlockSpec((1, 1, TH + 2, Wp, Cin),
                             lambda n, h: (n, h, 0, 0, 0)),
                pl.BlockSpec((C4, 9 * Cin), lambda n, h: (0, 0)),
                pl.BlockSpec((C4, 1), lambda n, h: (0, 0)),
            ],
            out_specs=pl.BlockSpec((1, C4, TH * W), lambda n, h: (n, 0, h)),
        ),
        compiler_params=pltpu.CompilerParams(
            dimension_semantics=("parallel", "parallel"),
            vmem_limit_bytes=32 * 1024 * 1024),
    )(strips, wt, sh)

    # Kernel output is already NCHW-major conv output, so PixelShuffle(2) is a
    # single reshape/transpose pass (the only post-kernel HBM pass).
    y = conv_flat.reshape(N, Cout, 2, 2, H, W)
    y = jnp.transpose(y, (0, 1, 4, 2, 5, 3)).reshape(N, Cout, 2 * H, 2 * W)
    return y


def upsample_reference(x_nchw, params, eps=1e-5):
    """Pure-JAX reference matching the PyTorch module (BN in eval mode)."""
    conv = lax.conv_general_dilated(
        x_nchw, params["w"], window_strides=(1, 1), padding=((1, 1), (1, 1)),
        dimension_numbers=("NCHW", "OIHW", "NCHW"))
    conv = conv + params["b"].reshape(1, -1, 1, 1)
    N, C4, H, W = conv.shape
    Cout = C4 // 4
    y = conv.reshape(N, Cout, 2, 2, H, W)
    y = jnp.transpose(y, (0, 1, 4, 2, 5, 3)).reshape(N, Cout, 2 * H, 2 * W)
    scale = params["gamma"] / jnp.sqrt(params["running_var"] + eps)
    shift = params["beta"] - params["running_mean"] * scale
    y = y * scale.reshape(1, -1, 1, 1) + shift.reshape(1, -1, 1, 1)
    return y * jax.nn.sigmoid(y)


if __name__ == "__main__":
    N, in_dim, out_dim, H, W = 2, 4, 4, 16, 16
    C4 = out_dim * 4

    k = jax.random.split(jax.random.PRNGKey(0), 7)
    fan_in = in_dim * 3 * 3
    bound = 1.0 / np.sqrt(fan_in)
    params = {
        "w": jax.random.uniform(k[0], (C4, in_dim, 3, 3), jnp.float32, -bound, bound),
        "b": jax.random.uniform(k[1], (C4,), jnp.float32, -bound, bound),
        "gamma": 1.0 + 0.1 * jax.random.normal(k[2], (out_dim,), jnp.float32),
        "beta": 0.1 * jax.random.normal(k[3], (out_dim,), jnp.float32),
        "running_mean": 0.05 * jax.random.normal(k[4], (out_dim,), jnp.float32),
        "running_var": jnp.abs(1.0 + 0.1 * jax.random.normal(k[5], (out_dim,), jnp.float32)),
    }
    x = jax.random.normal(k[6], (N, in_dim, H, W), jnp.float32)

    out = upsample_forward(x, params)
    out = jax.block_until_ready(out)

    ref = upsample_reference(x, params)
    # Tolerance loosened vs. the exact-divide version to cover the EUP
    # approximate reciprocal (~2^-12 rel err) used in the SiLU sigmoid.
    np.testing.assert_allclose(np.asarray(out), np.asarray(ref),
                               rtol=2e-3, atol=2e-3)
    print("KERNEL_OK")
</pallas_src>

<mosaic_0001>
module attributes {stable_mosaic.version = 11 : i64} {
  func.func @_upsample_kernel(%arg0: i32, %arg1: i32, %arg2: memref<1x1x10x18x4xf32, #tpu.memory_space<vmem>>, %arg3: memref<16x36xf32, #tpu.memory_space<vmem>>, %arg4: memref<16x1xf32, #tpu.memory_space<vmem>>, %arg5: memref<1x16x128xf32, #tpu.memory_space<vmem>>) attributes {dimension_semantics = [#tpu.dimension_semantics<parallel>, #tpu.dimension_semantics<parallel>], iteration_bounds = array<i64: 2, 2>, scalar_prefetch = 0 : i64, scratch_operands = 0 : i64, tpu.core_type = #tpu.core_type<tc>, window_params = [{transform_indices = @transform_0, window_bounds = array<i64: 1, 1, 10, 18, 4>}, {pipeline_mode = #tpu.pipeline_mode<synchronous>, transform_indices = @transform_1, window_bounds = array<i64: 16, 36>}, {pipeline_mode = #tpu.pipeline_mode<synchronous>, transform_indices = @transform_2, window_bounds = array<i64: 16, 1>}, {transform_indices = @transform_3, window_bounds = array<i64: 1, 16, 128>}]} {
    %c0 = arith.constant 0 : index
    %c0_0 = arith.constant 0 : index
    %c0_1 = arith.constant 0 : index
    %c0_2 = arith.constant 0 : index
    %c0_3 = arith.constant 0 : index
    %0 = vector.load %arg2[%c0, %c0_0, %c0_1, %c0_2, %c0_3] : memref<1x1x10x18x4xf32, #tpu.memory_space<vmem>>, vector<1x1x8x16x4xf32>
    %1 = vector.shape_cast %0 : vector<1x1x8x16x4xf32> to vector<8x16x4xf32>
    %c0_4 = arith.constant 0 : index
    %c0_5 = arith.constant 0 : index
    %c0_6 = arith.constant 0 : index
    %c1 = arith.constant 1 : index
    %c0_7 = arith.constant 0 : index
    %2 = vector.load %arg2[%c0_4, %c0_5, %c0_6, %c1, %c0_7] : memref<1x1x10x18x4xf32, #tpu.memory_space<vmem>>, vector<1x1x8x16x4xf32>
    %3 = vector.shape_cast %2 : vector<1x1x8x16x4xf32> to vector<8x16x4xf32>
    %c0_8 = arith.constant 0 : index
    %c0_9 = arith.constant 0 : index
    %c0_10 = arith.constant 0 : index
    %c2 = arith.constant 2 : index
    %c0_11 = arith.constant 0 : index
    %4 = vector.load %arg2[%c0_8, %c0_9, %c0_10, %c2, %c0_11] : memref<1x1x10x18x4xf32, #tpu.memory_space<vmem>>, vector<1x1x8x16x4xf32>
    %5 = vector.shape_cast %4 : vector<1x1x8x16x4xf32> to vector<8x16x4xf32>
    %c0_12 = arith.constant 0 : index
    %c0_13 = arith.constant 0 : index
    %c1_14 = arith.constant 1 : index
    %c0_15 = arith.constant 0 : index
    %c0_16 = arith.constant 0 : index
    %6 = vector.load %arg2[%c0_12, %c0_13, %c1_14, %c0_15, %c0_16] : memref<1x1x10x18x4xf32, #tpu.memory_space<vmem>>, vector<1x1x8x16x4xf32>
    %7 = vector.shape_cast %6 : vector<1x1x8x16x4xf32> to vector<8x16x4xf32>
    %c0_17 = arith.constant 0 : index
    %c0_18 = arith.constant 0 : index
    %c1_19 = arith.constant 1 : index
    %c1_20 = arith.constant 1 : index
    %c0_21 = arith.constant 0 : index
    %8 = vector.load %arg2[%c0_17, %c0_18, %c1_19, %c1_20, %c0_21] : memref<1x1x10x18x4xf32, #tpu.memory_space<vmem>>, vector<1x1x8x16x4xf32>
    %9 = vector.shape_cast %8 : vector<1x1x8x16x4xf32> to vector<8x16x4xf32>
    %c0_22 = arith.constant 0 : index
    %c0_23 = arith.constant 0 : index
    %c1_24 = arith.constant 1 : index
    %c2_25 = arith.constant 2 : index
    %c0_26 = arith.constant 0 : index
    %10 = vector.load %arg2[%c0_22, %c0_23, %c1_24, %c2_25, %c0_26] : memref<1x1x10x18x4xf32, #tpu.memory_space<vmem>>, vector<1x1x8x16x4xf32>
    %11 = vector.shape_cast %10 : vector<1x1x8x16x4xf32> to vector<8x16x4xf32>
    %c0_27 = arith.constant 0 : index
    %c0_28 = arith.constant 0 : index
    %c2_29 = arith.constant 2 : index
    %c0_30 = arith.constant 0 : index
    %c0_31 = arith.constant 0 : index
    %12 = vector.load %arg2[%c0_27, %c0_28, %c2_29, %c0_30, %c0_31] : memref<1x1x10x18x4xf32, #tpu.memory_space<vmem>>, vector<1x1x8x16x4xf32>
    %13 = vector.shape_cast %12 : vector<1x1x8x16x4xf32> to vector<8x16x4xf32>
    %c0_32 = arith.constant 0 : index
    %c0_33 = arith.constant 0 : index
    %c2_34 = arith.constant 2 : index
    %c1_35 = arith.constant 1 : index
    %c0_36 = arith.constant 0 : index
    %14 = vector.load %arg2[%c0_32, %c0_33, %c2_34, %c1_35, %c0_36] : memref<1x1x10x18x4xf32, #tpu.memory_space<vmem>>, vector<1x1x8x16x4xf32>
    %15 = vector.shape_cast %14 : vector<1x1x8x16x4xf32> to vector<8x16x4xf32>
    %c0_37 = arith.constant 0 : index
    %c0_38 = arith.constant 0 : index
    %c2_39 = arith.constant 2 : index
    %c2_40 = arith.constant 2 : index
    %c0_41 = arith.constant 0 : index
    %16 = vector.load %arg2[%c0_37, %c0_38, %c2_39, %c2_40, %c0_41] : memref<1x1x10x18x4xf32, #tpu.memory_space<vmem>>, vector<1x1x8x16x4xf32>
    %17 = vector.shape_cast %16 : vector<1x1x8x16x4xf32> to vector<8x16x4xf32>
    %18 = tpu.concatenate %1, %3, %5, %7, %9, %11, %13, %15, %17 in 2 : vector<8x16x4xf32>, vector<8x16x4xf32>, vector<8x16x4xf32>, vector<8x16x4xf32>, vector<8x16x4xf32>, vector<8x16x4xf32>, vector<8x16x4xf32>, vector<8x16x4xf32>, vector<8x16x4xf32> -> vector<8x16x36xf32>
    %19 = vector.shape_cast %18 : vector<8x16x36xf32> to vector<128x36xf32>
    %c0_42 = arith.constant 0 : index
    %c0_43 = arith.constant 0 : index
    %20 = vector.load %arg3[%c0_42, %c0_43] : memref<16x36xf32, #tpu.memory_space<vmem>>, vector<16x36xf32>
    %cst = arith.constant dense<0.000000e+00> : vector<16x128xf32>
    %21 = tpu.matmul %20, %19, %cst {dimension_numbers = #tpu.dot_dimension_numbers<[1], [1], [0], [0], [0, 0, 1, 0], [], []>} : vector<16x36xf32>, vector<128x36xf32>, vector<16x128xf32> -> vector<16x128xf32>
    %c0_44 = arith.constant 0 : index
    %c0_45 = arith.constant 0 : index
    %22 = vector.load %arg4[%c0_44, %c0_45] : memref<16x1xf32, #tpu.memory_space<vmem>>, vector<16x1xf32>
    %23 = vector.broadcast %22 : vector<16x1xf32> to vector<16x128xf32>
    %24 = arith.addf %21, %23 : vector<16x128xf32>
    %cst_46 = arith.constant 0.000000e+00 : f32
    %25 = vector.broadcast %cst_46 : f32 to vector<16x128xf32>
    %26 = arith.subf %25, %24 : vector<16x128xf32>
    %27 = math.exp %26 : vector<16x128xf32>
    %cst_47 = arith.constant 1.000000e+00 : f32
    %28 = vector.broadcast %cst_47 : f32 to vector<16x128xf32>
    %29 = arith.addf %28, %27 : vector<16x128xf32>
    %30 = tpu.reciprocal %29 {approx = true} : vector<16x128xf32> -> vector<16x128xf32>
    %31 = arith.mulf %24, %30 : vector<16x128xf32>
    %c0_48 = arith.constant 0 : index
    %c0_49 = arith.constant 0 : index
    %c0_50 = arith.constant 0 : index
    %32 = vector.load %arg5[%c0_48, %c0_49, %c0_50] : memref<1x16x128xf32, #tpu.memory_space<vmem>>, vector<1x16x128xf32>
    %33 = vector.shape_cast %32 : vector<1x16x128xf32> to vector<16x128xf32>
    %34 = vector.shape_cast %31 : vector<16x128xf32> to vector<1x16x128xf32>
    tpu.vector_store %arg5[%c0_48, %c0_49, %c0_50], %34 {strides = array<i32>} : memref<1x16x128xf32, #tpu.memory_space<vmem>>, vector<1x16x128xf32>,
    return
  }
  func.func @transform_0(%arg0: i32, %arg1: i32) -> (i32, i32, i32, i32, i32) {
    %c0_i32 = arith.constant 0 : i32
    %c0_i32_0 = arith.constant 0 : i32
    %c0_i32_1 = arith.constant 0 : i32
    %c0_i32_2 = arith.constant 0 : i32
    return %arg0, %arg1, %c0_i32, %c0_i32_0, %c0_i32_1 : i32, i32, i32, i32, i32
  }
  func.func @transform_1(%arg0: i32, %arg1: i32) -> (i32, i32) {
    %c0_i32 = arith.constant 0 : i32
    %c0_i32_0 = arith.constant 0 : i32
    %c0_i32_1 = arith.constant 0 : i32
    return %c0_i32, %c0_i32_0 : i32, i32
  }
  func.func @transform_2(%arg0: i32, %arg1: i32) -> (i32, i32) {
    %c0_i32 = arith.constant 0 : i32
    %c0_i32_0 = arith.constant 0 : i32
    %c0_i32_1 = arith.constant 0 : i32
    return %c0_i32, %c0_i32_0 : i32, i32
  }
  func.func @transform_3(%arg0: i32, %arg1: i32) -> (i32, i32, i32) {
    %c0_i32 = arith.constant 0 : i32
    %c0_i32_0 = arith.constant 0 : i32
    return %arg0, %c0_i32, %arg1 : i32, i32, i32
  }
}

</mosaic_0001>

<llo_original>
// kernel: tpu_custom_call.1
$region0: #{tpu_custom_call.1}
  #allocation0 [shape = 'u32[]', space=smem, size = 0x4, offset = 0x4, fixed_abs, tag = 'smem constant byte address 0x4 - core index']
  #allocation1 [shape = 'u32[144,128]{1,0:T(1,128)}', space=vmem, size = 0x12000, scoped, tag = 'internal scratch']
  %s0 = inlined_call_operand.vmem [shape: f32[2,2,10,18,4], index: 0, kind: input, shape index: {}]
  %s1 = inlined_call_operand.vmem [shape: f32[16,36], index: 1, kind: input, shape index: {}]
  %s2 = inlined_call_operand.vmem [shape: f32[16,1], index: 2, kind: input, shape index: {}]
  %s3 = inlined_call_operand.hbm [shape: f32[2,16,256], index: 3, kind: output, shape index: {}]
  %s4 = sld [smem:[#allocation0]]
  $region45: #{tpu_custom_call.1} parent=0
    _
  %s6 = ssub.s32 1, %s4
  %s7 = scalar_select 0, %s6, %s4
  $region1: #{tpu_custom_call.1} parent=0
    #allocation2 [shape = 'u8[16384]{0}', space=vmem, size = 0x4000, scoped, tag = 'output window, operand 0']
    #allocation3 [shape = 's32[2]{0}', space=sflag, size = 0x8, scoped, tag = 'scoped memory for tpu_custom_call.1']
    %8 = vsyncpa [#allocation3], 0
    %s9 = scalar_lea.sflag [#allocation3], 1
    %10 = vsyncpa %s9, 0
    loop: start=0, step=1, limit=6
    $region2: #{tpu_custom_call.1} parent=1 // loop_pre_header
      _
    $region3: #{tpu_custom_call.1} parent=1 // loop_header
      %s12 = sphi 0, %s16
      %p13 = scmp.ge.s32.totalorder %s12, 6
      %s19 = sphi 0, %s31
      %s20 = sphi 0, %s27
      %s21 = sphi 0, %s19
      %s22 = sphi 0, %s20
      %s23 = sphi 0, %s21
      %s24 = sphi 0, %s22
      %s36 = sphi 0, %s38
      %s39 = sphi 0, %s36
      %s40 = sphi 0, %s39
      %s56 = sphi 0, %s40
      %s60 = sphi 0, %s60
      %s62 = sphi 0, %s60
      %s63 = sphi 0, %s62
      %s77 = sphi 0, %s63
      %s81 = sphi 0, %s81
      %s83 = sphi 0, %s81
      %s84 = sphi 0, %s83
      %s98 = sphi 0, %s84
      %s106 = sphi 0, %s108
      %s109 = sphi 0, %s106
      %s110 = sphi 0, %s109
      %s126 = sphi 0, %s110
    $region4: #{tpu_custom_call.1} parent=1 // loop_header_branch
      %15 = sbr.rel (%p13) target = $region8
    $region5: #{tpu_custom_call.1} parent=1 // loop_body
      %s17 = ssub.s32 %s12, 1
      %s18 = ssub.s32 %s12, 2
      %s25 = sadd.s32 1, %s20
      %p26 = scmp.ge.s32.totalorder %s25, 2
      %s27 = scalar_select %p26, 0, %s25
      %s28 = sadd.s32 1, %s19
      %s29 = scalar_select %p26, %s28, %s19
      %p30 = scmp.ge.s32.totalorder %s29, 2
      %s31 = scalar_select %p30, 0, %s29
      %s32 = ssub.s32 %s19, %s31
      %s33 = ssub.s32 %s20, %s27
      %s34 = sor.u32 %s32, %s33
      %p35 = scmp.eq.s32.totalorder %s34, 0
      %s37 = sadd.s32 %s36, 1
      %s38 = scalar_select %p35, %s36, %s37
      %p41 = pneg %p35
      %p42 = scmp.eq.s32.totalorder %s12, 3
      %p43 = por %p41, %p42
      %p44 = scmp.ne.s32.totalorder %s36, %s39
      %p45 = scmp.eq.s32.totalorder %s12, 0
      %p46 = por %p44, %p45
      %p47 = scmp.ne.s32.totalorder %s36, %s39
      %p48 = scmp.eq.s32.totalorder %s17, 3
      %p49 = por %p47, %p48
      %p50 = scmp.ne.s32.totalorder %s39, %s40
      %p51 = scmp.eq.s32.totalorder %s17, 0
      %p52 = por %p50, %p51
      %p53 = scmp.ne.s32.totalorder %s39, %s40
      %p54 = scmp.eq.s32.totalorder %s18, 3
      %p55 = por %p53, %p54
      %p57 = scmp.ne.s32.totalorder %s40, %s56
      %p58 = scmp.eq.s32.totalorder %s18, 0
      %p59 = por %p57, %p58
      %s61 = sadd.s32 %s60, 1
      %p64 = scmp.eq.s32.totalorder %s12, 3
      %p65 = scmp.ne.s32.totalorder %s60, %s62
      %p66 = scmp.eq.s32.totalorder %s12, 0
      %p67 = por %p65, %p66
      %p68 = scmp.ne.s32.totalorder %s60, %s62
      %p69 = scmp.eq.s32.totalorder %s17, 3
      %p70 = por %p68, %p69
      %p71 = scmp.ne.s32.totalorder %s62, %s63
      %p72 = scmp.eq.s32.totalorder %s17, 0
      %p73 = por %p71, %p72
      %p74 = scmp.ne.s32.totalorder %s62, %s63
      %p75 = scmp.eq.s32.totalorder %s18, 3
      %p76 = por %p74, %p75
      %p78 = scmp.ne.s32.totalorder %s63, %s77
      %p79 = scmp.eq.s32.totalorder %s18, 0
      %p80 = por %p78, %p79
      %s82 = sadd.s32 %s81, 1
      %p85 = scmp.eq.s32.totalorder %s12, 3
      %p86 = scmp.ne.s32.totalorder %s81, %s83
      %p87 = scmp.eq.s32.totalorder %s12, 0
      %p88 = por %p86, %p87
      %p89 = scmp.ne.s32.totalorder %s81, %s83
      %p90 = scmp.eq.s32.totalorder %s17, 3
      %p91 = por %p89, %p90
      %p92 = scmp.ne.s32.totalorder %s83, %s84
      %p93 = scmp.eq.s32.totalorder %s17, 0
      %p94 = por %p92, %p93
      %p95 = scmp.ne.s32.totalorder %s83, %s84
      %p96 = scmp.eq.s32.totalorder %s18, 3
      %p97 = por %p95, %p96
      %p99 = scmp.ne.s32.totalorder %s84, %s98
      %p100 = scmp.eq.s32.totalorder %s18, 0
      %p101 = por %p99, %p100
      %s102 = ssub.s32 %s19, %s31
      %s103 = ssub.s32 %s20, %s27
      %s104 = sor.u32 %s102, %s103
      %p105 = scmp.eq.s32.totalorder %s104, 0
      %s107 = sadd.s32 %s106, 1
      %s108 = scalar_select %p105, %s106, %s107
      %p111 = pneg %p105
      %p112 = scmp.eq.s32.totalorder %s12, 3
      %p113 = por %p111, %p112
      %p114 = scmp.ne.s32.totalorder %s106, %s109
      %p115 = scmp.eq.s32.totalorder %s12, 0
      %p116 = por %p114, %p115
      %p117 = scmp.ne.s32.totalorder %s106, %s109
      %p118 = scmp.eq.s32.totalorder %s17, 3
      %p119 = por %p117, %p118
      %p120 = scmp.ne.s32.totalorder %s109, %s110
      %p121 = scmp.eq.s32.totalorder %s17, 0
      %p122 = por %p120, %p121
      %p123 = scmp.ne.s32.totalorder %s109, %s110
      %p124 = scmp.eq.s32.totalorder %s18, 3
      %p125 = por %p123, %p124
      %p127 = scmp.ne.s32.totalorder %s110, %s126
      %p128 = scmp.eq.s32.totalorder %s18, 0
      %p129 = por %p127, %p128
      %p130 = scmp.le.s32.totalorder 1, %s12
      %p131 = scmp.lt.s32.totalorder %s12, 5
      %p132 = pnand %p130, %p131
      %p133 = pneg %p132
      // Predicated region
      $region9: #{tpu_custom_call.1} parent=5 // pred_check
        _
      $region10: #{tpu_custom_call.1} parent=5 // pred_check_branch
        %135 = sbr.rel (%p132) target = $region12
      $region11: #{tpu_custom_call.1} parent=5 // pred_region
        %s136 = ssub.s32 %s12, 1
        // Predicated region
        $region13: #{tpu_custom_call.1} parent=11 // pred_check
          %p137 = pneg %p73
        $region14: #{tpu_custom_call.1} parent=11 // pred_check_branch
          %139 = sbr.rel (%p137) target = $region16
        $region15: #{tpu_custom_call.1} parent=11 // pred_region
          _
        $region16: #{tpu_custom_call.1} parent=11 // pred_fallthru
          _
        // Predicated region
        $region17: #{tpu_custom_call.1} parent=11 // pred_check
          %p140 = pneg %p94
        $region18: #{tpu_custom_call.1} parent=11 // pred_check_branch
          %142 = sbr.rel (%p140) target = $region20
        $region19: #{tpu_custom_call.1} parent=11 // pred_region
          _
        $region20: #{tpu_custom_call.1} parent=11 // pred_fallthru
          _
      $region12: #{tpu_custom_call.1} parent=5 // pred_fallthru
        _
      %p143 = scmp.lt.s32.totalorder %s12, 4
      // Predicated region
      $region21: #{tpu_custom_call.1} parent=5 // pred_check
        %p144 = pneg %p143
      $region22: #{tpu_custom_call.1} parent=5 // pred_check_branch
        %146 = sbr.rel (%p144) target = $region24
      $region23: #{tpu_custom_call.1} parent=5 // pred_region
        // Predicated region
        $region25: #{tpu_custom_call.1} parent=23 // pred_check
          %p147 = pneg %p46
        $region26: #{tpu_custom_call.1} parent=23 // pred_check_branch
          %149 = sbr.rel (%p147) target = $region28
        $region27: #{tpu_custom_call.1} parent=23 // pred_region
          %p150 = scmp.lt.s32.totalorder %s19, 1
          %s151 = scalar_select %p150, %s19, 1
          %p152 = scmp.lt.s32.totalorder %s20, 1
          %s153 = scalar_select %p152, %s20, 1
          %s154 = smul.addr %s153, 30
          %s155 = smul.addr %s151, 60
          %s156 = sadd.s32 %s154, %s155
          %s157 = smul.addr %s156, 8
          %s158 = scalar_lea.vmem %s0, %s157
        $region28: #{tpu_custom_call.1} parent=23 // pred_fallthru
          _
      $region24: #{tpu_custom_call.1} parent=5 // pred_fallthru
        _
      %p159 = scmp.le.s32.totalorder 1, %s12
      %p160 = scmp.lt.s32.totalorder %s12, 5
      %p161 = pnand %p159, %p160
      %p162 = pneg %p161
      // Predicated region
      $region29: #{tpu_custom_call.1} parent=5 // pred_check
        _
      $region30: #{tpu_custom_call.1} parent=5 // pred_check_branch
        %164 = sbr.rel (%p161) target = $region32
      $region31: #{tpu_custom_call.1} parent=5 // pred_region
        %s165 = ssub.s32 %s12, 1
        %p166 = scmp.lt.s32.totalorder %s21, 1
        %s167 = scalar_select %p166, %s21, 1
        %p168 = scmp.lt.s32.totalorder %s22, 1
        %s169 = scalar_select %p168, %s22, 1
        %s170 = smul.addr %s169, 30
        %s171 = smul.addr %s167, 60
        %s172 = sadd.s32 %s170, %s171
        %s173 = smul.addr %s172, 8
        %s174 = scalar_lea.vmem %s0, %s173
        %p175 = pneg %p52
        %p176 = pneg %p49
        %p177 = pneg %p73
        %p178 = pneg %p70
        %p179 = pneg %p94
        %p180 = pneg %p91
        %p181 = pneg %p122
        %p182 = pneg %p119
        %s183 = sand.u32 %s109, 1
        %s184 = scalar_lea.sflag [#allocation3], %s183
        %s185 = sand.u32 %s109, 1
        %s186 = smul.addr %s185, 16
        %s187 = scalar_lea.vmem [#allocation2], %s186
        %p188 = scmp.lt.s32.totalorder %s21, 1
        %s189 = scalar_select %p188, %s21, 1
        %p190 = scmp.lt.s32.totalorder %s22, 1
        %s191 = scalar_select %p190, %s22, 1
        %s192 = smul.addr %s191, 30
        %s193 = smul.addr %s189, 60
        %s194 = sadd.s32 %s192, %s193
        %s195 = smul.addr %s194, 8
        %s196 = scalar_lea.vmem %s0, %s195
        %v197 = vld [vmem:[%s196] sm:$0xff]
        %v198 = vld [vmem:[%s196 + $0x8] sm:$0xff]
        %v199 = vld [vmem:[%s196 + $0x18] sm:$0xff]
        %v200 = vld [vmem:[%s196 + $0x20] sm:$0xff]
        %v201 = vld [vmem:[%s196 + $0x30] sm:$0xff]
        %v202 = vld [vmem:[%s196 + $0x38] sm:$0xff]
        %v203 = vld [vmem:[%s196 + $0x48] sm:$0xff]
        %v204 = vld [vmem:[%s196 + $0x50] sm:$0xff]
        %v205 = vld [vmem:[%s196 + $0x60] sm:$0xff]
        %v206 = vld [vmem:[%s196 + $0x68] sm:$0xff]
        %v207 = vld [vmem:[%s196 + $0x78] sm:$0xff]
        %v208 = vld [vmem:[%s196 + $0x80] sm:$0xff]
        %v209 = vld [vmem:[%s196 + $0x90] sm:$0xff]
        %v210 = vld [vmem:[%s196 + $0x98] sm:$0xff]
        %v211 = vld [vmem:[%s196 + $0xa8] sm:$0xff]
        %v212 = vld [vmem:[%s196 + $0xb0] sm:$0xff]
        %v213 = vld [vmem:[%s196 + $0x1] sm:$0xff]
        %v214 = vld [vmem:[%s196 + $0x9] sm:$0xff]
        %v215 = vld [vmem:[%s196 + $0x19] sm:$0xff]
        %v216 = vld [vmem:[%s196 + $0x21] sm:$0xff]
        %v217 = vld [vmem:[%s196 + $0x31] sm:$0xff]
        %v218 = vld [vmem:[%s196 + $0x39] sm:$0xff]
        %v219 = vld [vmem:[%s196 + $0x49] sm:$0xff]
        %v220 = vld [vmem:[%s196 + $0x51] sm:$0xff]
        %v221 = vld [vmem:[%s196 + $0x61] sm:$0xff]
        %v222 = vld [vmem:[%s196 + $0x69] sm:$0xff]
        %v223 = vld [vmem:[%s196 + $0x79] sm:$0xff]
        %v224 = vld [vmem:[%s196 + $0x81] sm:$0xff]
        %v225 = vld [vmem:[%s196 + $0x91] sm:$0xff]
        %v226 = vld [vmem:[%s196 + $0x99] sm:$0xff]
        %v227 = vld [vmem:[%s196 + $0xa9] sm:$0xff]
        %v228 = vld [vmem:[%s196 + $0xb1] sm:$0xff]
        %v229 = vld [vmem:[%s196 + $0x2] sm:$0xff]
        %v230 = vld [vmem:[%s196 + $0xa] sm:$0xff]
        %v231 = vld [vmem:[%s196 + $0x1a] sm:$0xff]
        %v232 = vld [vmem:[%s196 + $0x22] sm:$0xff]
        %v233 = vld [vmem:[%s196 + $0x32] sm:$0xff]
        %v234 = vld [vmem:[%s196 + $0x3a] sm:$0xff]
        %v235 = vld [vmem:[%s196 + $0x4a] sm:$0xff]
        %v236 = vld [vmem:[%s196 + $0x52] sm:$0xff]
        %v237 = vld [vmem:[%s196 + $0x62] sm:$0xff]
        %v238 = vld [vmem:[%s196 + $0x6a] sm:$0xff]
        %v239 = vld [vmem:[%s196 + $0x7a] sm:$0xff]
        %v240 = vld [vmem:[%s196 + $0x82] sm:$0xff]
        %v241 = vld [vmem:[%s196 + $0x92] sm:$0xff]
        %v242 = vld [vmem:[%s196 + $0x9a] sm:$0xff]
        %v243 = vld [vmem:[%s196 + $0xaa] sm:$0xff]
        %v244 = vld [vmem:[%s196 + $0xb2] sm:$0xff]
        %s245 = scalar_lea.vmem %s196, 24
        %v246 = vld [vmem:[%s245] sm:$0xff]
        %v247 = vld [vmem:[%s245 + $0x8] sm:$0xff]
        %v248 = vld [vmem:[%s245 + $0x18] sm:$0xff]
        %v249 = vld [vmem:[%s245 + $0x20] sm:$0xff]
        %v250 = vld [vmem:[%s245 + $0x30] sm:$0xff]
        %v251 = vld [vmem:[%s245 + $0x38] sm:$0xff]
        %v252 = vld [vmem:[%s245 + $0x48] sm:$0xff]
        %v253 = vld [vmem:[%s245 + $0x50] sm:$0xff]
        %v254 = vld [vmem:[%s245 + $0x60] sm:$0xff]
        %v255 = vld [vmem:[%s245 + $0x68] sm:$0xff]
        %v256 = vld [vmem:[%s245 + $0x78] sm:$0xff]
        %v257 = vld [vmem:[%s245 + $0x80] sm:$0xff]
        %v258 = vld [vmem:[%s245 + $0x90] sm:$0xff]
        %v259 = vld [vmem:[%s245 + $0x98] sm:$0xff]
        %v260 = vld [vmem:[%s245 + $0xa8] sm:$0xff]
        %v261 = vld [vmem:[%s245 + $0xb0] sm:$0xff]
        %v262 = vld [vmem:[%s245 + $0x1] sm:$0xff]
        %v263 = vld [vmem:[%s245 + $0x9] sm:$0xff]
        %v264 = vld [vmem:[%s245 + $0x19] sm:$0xff]
        %v265 = vld [vmem:[%s245 + $0x21] sm:$0xff]
        %v266 = vld [vmem:[%s245 + $0x31] sm:$0xff]
        %v267 = vld [vmem:[%s245 + $0x39] sm:$0xff]
        %v268 = vld [vmem:[%s245 + $0x49] sm:$0xff]
        %v269 = vld [vmem:[%s245 + $0x51] sm:$0xff]
        %v270 = vld [vmem:[%s245 + $0x61] sm:$0xff]
        %v271 = vld [vmem:[%s245 + $0x69] sm:$0xff]
        %v272 = vld [vmem:[%s245 + $0x79] sm:$0xff]
        %v273 = vld [vmem:[%s245 + $0x81] sm:$0xff]
        %v274 = vld [vmem:[%s245 + $0x91] sm:$0xff]
        %v275 = vld [vmem:[%s245 + $0x99] sm:$0xff]
        %v276 = vld [vmem:[%s245 + $0xa9] sm:$0xff]
        %v277 = vld [vmem:[%s245 + $0xb1] sm:$0xff]
        %v278 = vld [vmem:[%s245 + $0x2] sm:$0xff]
        %v279 = vld [vmem:[%s245 + $0xa] sm:$0xff]
        %v280 = vld [vmem:[%s245 + $0x1a] sm:$0xff]
        %v281 = vld [vmem:[%s245 + $0x22] sm:$0xff]
        %v282 = vld [vmem:[%s245 + $0x32] sm:$0xff]
        %v283 = vld [vmem:[%s245 + $0x3a] sm:$0xff]
        %v284 = vld [vmem:[%s245 + $0x4a] sm:$0xff]
        %v285 = vld [vmem:[%s245 + $0x52] sm:$0xff]
        %v286 = vld [vmem:[%s245 + $0x62] sm:$0xff]
        %v287 = vld [vmem:[%s245 + $0x6a] sm:$0xff]
        %v288 = vld [vmem:[%s245 + $0x7a] sm:$0xff]
        %v289 = vld [vmem:[%s245 + $0x82] sm:$0xff]
        %v290 = vld [vmem:[%s245 + $0x92] sm:$0xff]
        %v291 = vld [vmem:[%s245 + $0x9a] sm:$0xff]
        %v292 = vld [vmem:[%s245 + $0xaa] sm:$0xff]
        %v293 = vld [vmem:[%s245 + $0xb2] sm:$0xff]
        %s294 = scalar_lea.vmem %s196, 48
        %v295 = vld [vmem:[%s294] sm:$0xff]
        %v296 = vld [vmem:[%s294 + $0x8] sm:$0xff]
        %v297 = vld [vmem:[%s294 + $0x18] sm:$0xff]
        %v298 = vld [vmem:[%s294 + $0x20] sm:$0xff]
        %v299 = vld [vmem:[%s294 + $0x30] sm:$0xff]
        %v300 = vld [vmem:[%s294 + $0x38] sm:$0xff]
        %v301 = vld [vmem:[%s294 + $0x48] sm:$0xff]
        %v302 = vld [vmem:[%s294 + $0x50] sm:$0xff]
        %v303 = vld [vmem:[%s294 + $0x60] sm:$0xff]
        %v304 = vld [vmem:[%s294 + $0x68] sm:$0xff]
        %v305 = vld [vmem:[%s294 + $0x78] sm:$0xff]
        %v306 = vld [vmem:[%s294 + $0x80] sm:$0xff]
        %v307 = vld [vmem:[%s294 + $0x90] sm:$0xff]
        %v308 = vld [vmem:[%s294 + $0x98] sm:$0xff]
        %v309 = vld [vmem:[%s294 + $0xa8] sm:$0xff]
        %v310 = vld [vmem:[%s294 + $0xb0] sm:$0xff]
        %v311 = vld [vmem:[%s294 + $0x1] sm:$0xff]
        %v312 = vld [vmem:[%s294 + $0x9] sm:$0xff]
        %v313 = vld [vmem:[%s294 + $0x19] sm:$0xff]
        %v314 = vld [vmem:[%s294 + $0x21] sm:$0xff]
        %v315 = vld [vmem:[%s294 + $0x31] sm:$0xff]
        %v316 = vld [vmem:[%s294 + $0x39] sm:$0xff]
        %v317 = vld [vmem:[%s294 + $0x49] sm:$0xff]
        %v318 = vld [vmem:[%s294 + $0x51] sm:$0xff]
        %v319 = vld [vmem:[%s294 + $0x61] sm:$0xff]
        %v320 = vld [vmem:[%s294 + $0x69] sm:$0xff]
        %v321 = vld [vmem:[%s294 + $0x79] sm:$0xff]
        %v322 = vld [vmem:[%s294 + $0x81] sm:$0xff]
        %v323 = vld [vmem:[%s294 + $0x91] sm:$0xff]
        %v324 = vld [vmem:[%s294 + $0x99] sm:$0xff]
        %v325 = vld [vmem:[%s294 + $0xa9] sm:$0xff]
        %v326 = vld [vmem:[%s294 + $0xb1] sm:$0xff]
        %v327 = vld [vmem:[%s294 + $0x2] sm:$0xff]
        %v328 = vld [vmem:[%s294 + $0xa] sm:$0xff]
        %v329 = vld [vmem:[%s294 + $0x1a] sm:$0xff]
        %v330 = vld [vmem:[%s294 + $0x22] sm:$0xff]
        %v331 = vld [vmem:[%s294 + $0x32] sm:$0xff]
        %v332 = vld [vmem:[%s294 + $0x3a] sm:$0xff]
        %v333 = vld [vmem:[%s294 + $0x4a] sm:$0xff]
        %v334 = vld [vmem:[%s294 + $0x52] sm:$0xff]
        %v335 = vld [vmem:[%s294 + $0x62] sm:$0xff]
        %v336 = vld [vmem:[%s294 + $0x6a] sm:$0xff]
        %v337 = vld [vmem:[%s294 + $0x7a] sm:$0xff]
        %v338 = vld [vmem:[%s294 + $0x82] sm:$0xff]
        %v339 = vld [vmem:[%s294 + $0x92] sm:$0xff]
        %v340 = vld [vmem:[%s294 + $0x9a] sm:$0xff]
        %v341 = vld [vmem:[%s294 + $0xaa] sm:$0xff]
        %v342 = vld [vmem:[%s294 + $0xb2] sm:$0xff]
        %359 = vrot.lane.b32.xlu0 %v213, 4
        %v360 = vpop.permute.xlu0 %359
        %361 = vrot.lane.b32.xlu0 %v214, 4
        %v362 = vpop.permute.xlu0 %361
        %363 = vrot.lane.b32.xlu0 %v215, 4
        %v364 = vpop.permute.xlu0 %363
        %365 = vrot.lane.b32.xlu0 %v216, 4
        %v366 = vpop.permute.xlu0 %365
        %367 = vrot.lane.b32.xlu0 %v217, 4
        %v368 = vpop.permute.xlu0 %367
        %369 = vrot.lane.b32.xlu0 %v218, 4
        %v370 = vpop.permute.xlu0 %369
        %371 = vrot.lane.b32.xlu0 %v219, 4
        %v372 = vpop.permute.xlu0 %371
        %373 = vrot.lane.b32.xlu0 %v220, 4
        %v374 = vpop.permute.xlu0 %373
        %375 = vrot.lane.b32.xlu0 %v221, 4
        %v376 = vpop.permute.xlu0 %375
        %377 = vrot.lane.b32.xlu0 %v222, 4
        %v378 = vpop.permute.xlu0 %377
        %379 = vrot.lane.b32.xlu0 %v223, 4
        %v380 = vpop.permute.xlu0 %379
        %381 = vrot.lane.b32.xlu0 %v224, 4
        %v382 = vpop.permute.xlu0 %381
        %383 = vrot.lane.b32.xlu0 %v225, 4
        %v384 = vpop.permute.xlu0 %383
        %385 = vrot.lane.b32.xlu0 %v226, 4
        %v386 = vpop.permute.xlu0 %385
        %387 = vrot.lane.b32.xlu0 %v227, 4
        %v388 = vpop.permute.xlu0 %387
        %389 = vrot.lane.b32.xlu0 %v228, 4
        %v390 = vpop.permute.xlu0 %389
        %423 = vrot.lane.b32.xlu0 %v229, 8
        %v424 = vpop.permute.xlu0 %423
        %425 = vrot.lane.b32.xlu0 %v230, 8
        %v426 = vpop.permute.xlu0 %425
        %427 = vrot.lane.b32.xlu0 %v231, 8
        %v428 = vpop.permute.xlu0 %427
        %429 = vrot.lane.b32.xlu0 %v232, 8
        %v430 = vpop.permute.xlu0 %429
        %431 = vrot.lane.b32.xlu0 %v233, 8
        %v432 = vpop.permute.xlu0 %431
        %433 = vrot.lane.b32.xlu0 %v234, 8
        %v434 = vpop.permute.xlu0 %433
        %435 = vrot.lane.b32.xlu0 %v235, 8
        %v436 = vpop.permute.xlu0 %435
        %437 = vrot.lane.b32.xlu0 %v236, 8
        %v438 = vpop.permute.xlu0 %437
        %439 = vrot.lane.b32.xlu0 %v237, 8
        %v440 = vpop.permute.xlu0 %439
        %441 = vrot.lane.b32.xlu0 %v238, 8
        %v442 = vpop.permute.xlu0 %441
        %443 = vrot.lane.b32.xlu0 %v239, 8
        %v444 = vpop.permute.xlu0 %443
        %445 = vrot.lane.b32.xlu0 %v240, 8
        %v446 = vpop.permute.xlu0 %445
        %447 = vrot.lane.b32.xlu0 %v241, 8
        %v448 = vpop.permute.xlu0 %447
        %449 = vrot.lane.b32.xlu0 %v242, 8
        %v450 = vpop.permute.xlu0 %449
        %451 = vrot.lane.b32.xlu0 %v243, 8
        %v452 = vpop.permute.xlu0 %451
        %453 = vrot.lane.b32.xlu0 %v244, 8
        %v454 = vpop.permute.xlu0 %453
        %487 = vrot.lane.b32.xlu0 %v246, 12
        %v488 = vpop.permute.xlu0 %487
        %489 = vrot.lane.b32.xlu0 %v247, 12
        %v490 = vpop.permute.xlu0 %489
        %491 = vrot.lane.b32.xlu0 %v248, 12
        %v492 = vpop.permute.xlu0 %491
        %493 = vrot.lane.b32.xlu0 %v249, 12
        %v494 = vpop.permute.xlu0 %493
        %495 = vrot.lane.b32.xlu0 %v250, 12
        %v496 = vpop.permute.xlu0 %495
        %497 = vrot.lane.b32.xlu0 %v251, 12
        %v498 = vpop.permute.xlu0 %497
        %499 = vrot.lane.b32.xlu0 %v252, 12
        %v500 = vpop.permute.xlu0 %499
        %501 = vrot.lane.b32.xlu0 %v253, 12
        %v502 = vpop.permute.xlu0 %501
        %503 = vrot.lane.b32.xlu0 %v254, 12
        %v504 = vpop.permute.xlu0 %503
        %505 = vrot.lane.b32.xlu0 %v255, 12
        %v506 = vpop.permute.xlu0 %505
        %507 = vrot.lane.b32.xlu0 %v256, 12
        %v508 = vpop.permute.xlu0 %507
        %509 = vrot.lane.b32.xlu0 %v257, 12
        %v510 = vpop.permute.xlu0 %509
        %511 = vrot.lane.b32.xlu0 %v258, 12
        %v512 = vpop.permute.xlu0 %511
        %513 = vrot.lane.b32.xlu0 %v259, 12
        %v514 = vpop.permute.xlu0 %513
        %515 = vrot.lane.b32.xlu0 %v260, 12
        %v516 = vpop.permute.xlu0 %515
        %517 = vrot.lane.b32.xlu0 %v261, 12
        %v518 = vpop.permute.xlu0 %517
        %551 = vrot.lane.b32.xlu0 %v262, 16
        %v552 = vpop.permute.xlu0 %551
        %553 = vrot.lane.b32.xlu0 %v263, 16
        %v554 = vpop.permute.xlu0 %553
        %555 = vrot.lane.b32.xlu0 %v264, 16
        %v556 = vpop.permute.xlu0 %555
        %557 = vrot.lane.b32.xlu0 %v265, 16
        %v558 = vpop.permute.xlu0 %557
        %559 = vrot.lane.b32.xlu0 %v266, 16
        %v560 = vpop.permute.xlu0 %559
        %561 = vrot.lane.b32.xlu0 %v267, 16
        %v562 = vpop.permute.xlu0 %561
        %563 = vrot.lane.b32.xlu0 %v268, 16
        %v564 = vpop.permute.xlu0 %563
        %565 = vrot.lane.b32.xlu0 %v269, 16
        %v566 = vpop.permute.xlu0 %565
        %567 = vrot.lane.b32.xlu0 %v270, 16
        %v568 = vpop.permute.xlu0 %567
        %569 = vrot.lane.b32.xlu0 %v271, 16
        %v570 = vpop.permute.xlu0 %569
        %571 = vrot.lane.b32.xlu0 %v272, 16
        %v572 = vpop.permute.xlu0 %571
        %573 = vrot.lane.b32.xlu0 %v273, 16
        %v574 = vpop.permute.xlu0 %573
        %575 = vrot.lane.b32.xlu0 %v274, 16
        %v576 = vpop.permute.xlu0 %575
        %577 = vrot.lane.b32.xlu0 %v275, 16
        %v578 = vpop.permute.xlu0 %577
        %579 = vrot.lane.b32.xlu0 %v276, 16
        %v580 = vpop.permute.xlu0 %579
        %581 = vrot.lane.b32.xlu0 %v277, 16
        %v582 = vpop.permute.xlu0 %581
        %615 = vrot.lane.b32.xlu0 %v278, 20
        %v616 = vpop.permute.xlu0 %615
        %617 = vrot.lane.b32.xlu0 %v279, 20
        %v618 = vpop.permute.xlu0 %617
        %619 = vrot.lane.b32.xlu0 %v280, 20
        %v620 = vpop.permute.xlu0 %619
        %621 = vrot.lane.b32.xlu0 %v281, 20
        %v622 = vpop.permute.xlu0 %621
        %623 = vrot.lane.b32.xlu0 %v282, 20
        %v624 = vpop.permute.xlu0 %623
        %625 = vrot.lane.b32.xlu0 %v283, 20
        %v626 = vpop.permute.xlu0 %625
        %627 = vrot.lane.b32.xlu0 %v284, 20
        %v628 = vpop.permute.xlu0 %627
        %629 = vrot.lane.b32.xlu0 %v285, 20
        %v630 = vpop.permute.xlu0 %629
        %631 = vrot.lane.b32.xlu0 %v286, 20
        %v632 = vpop.permute.xlu0 %631
        %633 = vrot.lane.b32.xlu0 %v287, 20
        %v634 = vpop.permute.xlu0 %633
        %635 = vrot.lane.b32.xlu0 %v288, 20
        %v636 = vpop.permute.xlu0 %635
        %637 = vrot.lane.b32.xlu0 %v289, 20
        %v638 = vpop.permute.xlu0 %637
        %639 = vrot.lane.b32.xlu0 %v290, 20
        %v640 = vpop.permute.xlu0 %639
        %641 = vrot.lane.b32.xlu0 %v291, 20
        %v642 = vpop.permute.xlu0 %641
        %643 = vrot.lane.b32.xlu0 %v292, 20
        %v644 = vpop.permute.xlu0 %643
        %645 = vrot.lane.b32.xlu0 %v293, 20
        %v646 = vpop.permute.xlu0 %645
        %679 = vrot.lane.b32.xlu0 %v295, 24
        %v680 = vpop.permute.xlu0 %679
        %681 = vrot.lane.b32.xlu0 %v296, 24
        %v682 = vpop.permute.xlu0 %681
        %683 = vrot.lane.b32.xlu0 %v297, 24
        %v684 = vpop.permute.xlu0 %683
        %685 = vrot.lane.b32.xlu0 %v298, 24
        %v686 = vpop.permute.xlu0 %685
        %687 = vrot.lane.b32.xlu0 %v299, 24
        %v688 = vpop.permute.xlu0 %687
        %689 = vrot.lane.b32.xlu0 %v300, 24
        %v690 = vpop.permute.xlu0 %689
        %691 = vrot.lane.b32.xlu0 %v301, 24
        %v692 = vpop.permute.xlu0 %691
        %693 = vrot.lane.b32.xlu0 %v302, 24
        %v694 = vpop.permute.xlu0 %693
        %695 = vrot.lane.b32.xlu0 %v303, 24
        %v696 = vpop.permute.xlu0 %695
        %697 = vrot.lane.b32.xlu0 %v304, 24
        %v698 = vpop.permute.xlu0 %697
        %699 = vrot.lane.b32.xlu0 %v305, 24
        %v700 = vpop.permute.xlu0 %699
        %701 = vrot.lane.b32.xlu0 %v306, 24
        %v702 = vpop.permute.xlu0 %701
        %703 = vrot.lane.b32.xlu0 %v307, 24
        %v704 = vpop.permute.xlu0 %703
        %705 = vrot.lane.b32.xlu0 %v308, 24
        %v706 = vpop.permute.xlu0 %705
        %707 = vrot.lane.b32.xlu0 %v309, 24
        %v708 = vpop.permute.xlu0 %707
        %709 = vrot.lane.b32.xlu0 %v310, 24
        %v710 = vpop.permute.xlu0 %709
        %743 = vrot.lane.b32.xlu0 %v311, 28
        %v744 = vpop.permute.xlu0 %743
        %745 = vrot.lane.b32.xlu0 %v312, 28
        %v746 = vpop.permute.xlu0 %745
        %747 = vrot.lane.b32.xlu0 %v313, 28
        %v748 = vpop.permute.xlu0 %747
        %749 = vrot.lane.b32.xlu0 %v314, 28
        %v750 = vpop.permute.xlu0 %749
        %751 = vrot.lane.b32.xlu0 %v315, 28
        %v752 = vpop.permute.xlu0 %751
        %753 = vrot.lane.b32.xlu0 %v316, 28
        %v754 = vpop.permute.xlu0 %753
        %755 = vrot.lane.b32.xlu0 %v317, 28
        %v756 = vpop.permute.xlu0 %755
        %757 = vrot.lane.b32.xlu0 %v318, 28
        %v758 = vpop.permute.xlu0 %757
        %759 = vrot.lane.b32.xlu0 %v319, 28
        %v760 = vpop.permute.xlu0 %759
        %761 = vrot.lane.b32.xlu0 %v320, 28
        %v762 = vpop.permute.xlu0 %761
        %763 = vrot.lane.b32.xlu0 %v321, 28
        %v764 = vpop.permute.xlu0 %763
        %765 = vrot.lane.b32.xlu0 %v322, 28
        %v766 = vpop.permute.xlu0 %765
        %767 = vrot.lane.b32.xlu0 %v323, 28
        %v768 = vpop.permute.xlu0 %767
        %769 = vrot.lane.b32.xlu0 %v324, 28
        %v770 = vpop.permute.xlu0 %769
        %771 = vrot.lane.b32.xlu0 %v325, 28
        %v772 = vpop.permute.xlu0 %771
        %773 = vrot.lane.b32.xlu0 %v326, 28
        %v774 = vpop.permute.xlu0 %773
        %807 = vrot.lane.b32.xlu0 %v327, 32
        %v808 = vpop.permute.xlu0 %807
        %809 = vrot.lane.b32.xlu0 %v328, 32
        %v810 = vpop.permute.xlu0 %809
        %811 = vrot.lane.b32.xlu0 %v329, 32
        %v812 = vpop.permute.xlu0 %811
        %813 = vrot.lane.b32.xlu0 %v330, 32
        %v814 = vpop.permute.xlu0 %813
        %815 = vrot.lane.b32.xlu0 %v331, 32
        %v816 = vpop.permute.xlu0 %815
        %817 = vrot.lane.b32.xlu0 %v332, 32
        %v818 = vpop.permute.xlu0 %817
        %819 = vrot.lane.b32.xlu0 %v333, 32
        %v820 = vpop.permute.xlu0 %819
        %821 = vrot.lane.b32.xlu0 %v334, 32
        %v822 = vpop.permute.xlu0 %821
        %823 = vrot.lane.b32.xlu0 %v335, 32
        %v824 = vpop.permute.xlu0 %823
        %825 = vrot.lane.b32.xlu0 %v336, 32
        %v826 = vpop.permute.xlu0 %825
        %827 = vrot.lane.b32.xlu0 %v337, 32
        %v828 = vpop.permute.xlu0 %827
        %829 = vrot.lane.b32.xlu0 %v338, 32
        %v830 = vpop.permute.xlu0 %829
        %831 = vrot.lane.b32.xlu0 %v339, 32
        %v832 = vpop.permute.xlu0 %831
        %833 = vrot.lane.b32.xlu0 %v340, 32
        %v834 = vpop.permute.xlu0 %833
        %835 = vrot.lane.b32.xlu0 %v341, 32
        %v836 = vpop.permute.xlu0 %835
        %837 = vrot.lane.b32.xlu0 %v342, 32
        %v838 = vpop.permute.xlu0 %837
        %vm855 = vcmask 31744
        %v856 = vsel %vm855, %v197, %v360
        %v857 = vsel %vm855, %v198, %v362
        %v858 = vsel %vm855, %v199, %v364
        %v859 = vsel %vm855, %v200, %v366
        %v860 = vsel %vm855, %v201, %v368
        %v861 = vsel %vm855, %v202, %v370
        %v862 = vsel %vm855, %v203, %v372
        %v863 = vsel %vm855, %v204, %v374
        %v864 = vsel %vm855, %v205, %v376
        %v865 = vsel %vm855, %v206, %v378
        %v866 = vsel %vm855, %v207, %v380
        %v867 = vsel %vm855, %v208, %v382
        %v868 = vsel %vm855, %v209, %v384
        %v869 = vsel %vm855, %v210, %v386
        %v870 = vsel %vm855, %v211, %v388
        %v871 = vsel %vm855, %v212, %v390
        %vm872 = vcmask 64512
        %v873 = vsel %vm872, %v856, %v424
        %v874 = vsel %vm872, %v857, %v426
        %v875 = vsel %vm872, %v858, %v428
        %v876 = vsel %vm872, %v859, %v430
        %v877 = vsel %vm872, %v860, %v432
        %v878 = vsel %vm872, %v861, %v434
        %v879 = vsel %vm872, %v862, %v436
        %v880 = vsel %vm872, %v863, %v438
        %v881 = vsel %vm872, %v864, %v440
        %v882 = vsel %vm872, %v865, %v442
        %v883 = vsel %vm872, %v866, %v444
        %v884 = vsel %vm872, %v867, %v446
        %v885 = vsel %vm872, %v868, %v448
        %v886 = vsel %vm872, %v869, %v450
        %v887 = vsel %vm872, %v870, %v452
        %v888 = vsel %vm872, %v871, %v454
        %vm889 = vcmask 97280
        %v890 = vsel %vm889, %v873, %v488
        %v891 = vsel %vm889, %v874, %v490
        %v892 = vsel %vm889, %v875, %v492
        %v893 = vsel %vm889, %v876, %v494
        %v894 = vsel %vm889, %v877, %v496
        %v895 = vsel %vm889, %v878, %v498
        %v896 = vsel %vm889, %v879, %v500
        %v897 = vsel %vm889, %v880, %v502
        %v898 = vsel %vm889, %v881, %v504
        %v899 = vsel %vm889, %v882, %v506
        %v900 = vsel %vm889, %v883, %v508
        %v901 = vsel %vm889, %v884, %v510
        %v902 = vsel %vm889, %v885, %v512
        %v903 = vsel %vm889, %v886, %v514
        %v904 = vsel %vm889, %v887, %v516
        %v905 = vsel %vm889, %v888, %v518
        %vm906 = vcmask 130048
        %v907 = vsel %vm906, %v890, %v552
        %v908 = vsel %vm906, %v891, %v554
        %v909 = vsel %vm906, %v892, %v556
        %v910 = vsel %vm906, %v893, %v558
        %v911 = vsel %vm906, %v894, %v560
        %v912 = vsel %vm906, %v895, %v562
        %v913 = vsel %vm906, %v896, %v564
        %v914 = vsel %vm906, %v897, %v566
        %v915 = vsel %vm906, %v898, %v568
        %v916 = vsel %vm906, %v899, %v570
        %v917 = vsel %vm906, %v900, %v572
        %v918 = vsel %vm906, %v901, %v574
        %v919 = vsel %vm906, %v902, %v576
        %v920 = vsel %vm906, %v903, %v578
        %v921 = vsel %vm906, %v904, %v580
        %v922 = vsel %vm906, %v905, %v582
        %vm923 = vcmask 162816
        %v924 = vsel %vm923, %v907, %v616
        %v925 = vsel %vm923, %v908, %v618
        %v926 = vsel %vm923, %v909, %v620
        %v927 = vsel %vm923, %v910, %v622
        %v928 = vsel %vm923, %v911, %v624
        %v929 = vsel %vm923, %v912, %v626
        %v930 = vsel %vm923, %v913, %v628
        %v931 = vsel %vm923, %v914, %v630
        %v932 = vsel %vm923, %v915, %v632
        %v933 = vsel %vm923, %v916, %v634
        %v934 = vsel %vm923, %v917, %v636
        %v935 = vsel %vm923, %v918, %v638
        %v936 = vsel %vm923, %v919, %v640
        %v937 = vsel %vm923, %v920, %v642
        %v938 = vsel %vm923, %v921, %v644
        %v939 = vsel %vm923, %v922, %v646
        %vm940 = vcmask 195584
        %v941 = vsel %vm940, %v924, %v680
        %v942 = vsel %vm940, %v925, %v682
        %v943 = vsel %vm940, %v926, %v684
        %v944 = vsel %vm940, %v927, %v686
        %v945 = vsel %vm940, %v928, %v688
        %v946 = vsel %vm940, %v929, %v690
        %v947 = vsel %vm940, %v930, %v692
        %v948 = vsel %vm940, %v931, %v694
        %v949 = vsel %vm940, %v932, %v696
        %v950 = vsel %vm940, %v933, %v698
        %v951 = vsel %vm940, %v934, %v700
        %v952 = vsel %vm940, %v935, %v702
        %v953 = vsel %vm940, %v936, %v704
        %v954 = vsel %vm940, %v937, %v706
        %v955 = vsel %vm940, %v938, %v708
        %v956 = vsel %vm940, %v939, %v710
        %vm957 = vcmask 228352
        %v958 = vsel %vm957, %v941, %v744
        %v959 = vsel %vm957, %v942, %v746
        %v960 = vsel %vm957, %v943, %v748
        %v961 = vsel %vm957, %v944, %v750
        %v962 = vsel %vm957, %v945, %v752
        %v963 = vsel %vm957, %v946, %v754
        %v964 = vsel %vm957, %v947, %v756
        %v965 = vsel %vm957, %v948, %v758
        %v966 = vsel %vm957, %v949, %v760
        %v967 = vsel %vm957, %v950, %v762
        %v968 = vsel %vm957, %v951, %v764
        %v969 = vsel %vm957, %v952, %v766
        %v970 = vsel %vm957, %v953, %v768
        %v971 = vsel %vm957, %v954, %v770
        %v972 = vsel %vm957, %v955, %v772
        %v973 = vsel %vm957, %v956, %v774
        %vm974 = vcmask 261120
        %v975 = vsel %vm974, %v958, %v808
        %v976 = vsel %vm974, %v959, %v810
        %v977 = vsel %vm974, %v960, %v812
        %v978 = vsel %vm974, %v961, %v814
        %v979 = vsel %vm974, %v962, %v816
        %v980 = vsel %vm974, %v963, %v818
        %v981 = vsel %vm974, %v964, %v820
        %v982 = vsel %vm974, %v965, %v822
        %v983 = vsel %vm974, %v966, %v824
        %v984 = vsel %vm974, %v967, %v826
        %v985 = vsel %vm974, %v968, %v828
        %v986 = vsel %vm974, %v969, %v830
        %v987 = vsel %vm974, %v970, %v832
        %v988 = vsel %vm974, %v971, %v834
        %v989 = vsel %vm974, %v972, %v836
        %v990 = vsel %vm974, %v973, %v838
        %v991 = vld [vmem:[%s1] sm:$0xff]
        %v992 = vld [vmem:[%s1 + $0x8] sm:$0xff]
        %v993 = vld [vmem:[%s2] sm:$0xff]
        %v994 = vld [vmem:[%s2 + $0x8] sm:$0xff]
        %996 = vset.pattern.permute.xlu0 0
        %997 = vperm.xlu0 %996, %v993
        %v998 = vpop.permute.xlu0 %997
        %1001 = vset.pattern.permute.xlu0 0
        %1002 = vperm.xlu0 %1001, %v994
        %v1003 = vpop.permute.xlu0 %1002
        %vm1005 = vcmask 293888
        %v1007 = vsel %vm1005, %v991, 0
        %v1010 = vsel %vm1005, %v992, 0
        %v1013 = vsel %vm1005, %v975, 0
        %v1016 = vsel %vm1005, %v976, 0
        %v1019 = vsel %vm1005, %v977, 0
        %v1022 = vsel %vm1005, %v978, 0
        %v1025 = vsel %vm1005, %v979, 0
        %v1028 = vsel %vm1005, %v980, 0
        %v1031 = vsel %vm1005, %v981, 0
        %v1034 = vsel %vm1005, %v982, 0
        %v1037 = vsel %vm1005, %v983, 0
        %v1040 = vsel %vm1005, %v984, 0
        %v1043 = vsel %vm1005, %v985, 0
        %v1046 = vsel %vm1005, %v986, 0
        %v1049 = vsel %vm1005, %v987, 0
        %v1052 = vsel %vm1005, %v988, 0
        %v1055 = vsel %vm1005, %v989, 0
        %v1058 = vsel %vm1005, %v990, 0
        %1060 = vmatprep.subr.mxu0 0.0
        %1061 = vmatpush1.xpose.msra.mxu0 %v1058
        %1062 = vmatprep.subr.mxu0 0.0
        %1063 = vmatpush1.xpose.msra.mxu0 %v1055
        %1064 = vmatprep.subr.mxu0 0.0
        %1065 = vmatpush1.xpose.msra.mxu0 %v1052
        %1066 = vmatprep.subr.mxu0 0.0
        %1067 = vmatpush1.xpose.msra.mxu0 %v1049
        %1068 = vmatprep.subr.mxu0 0.0
        %1069 = vmatpush1.xpose.msra.mxu0 %v1046
        %1070 = vmatprep.subr.mxu0 0.0
        %1071 = vmatpush1.xpose.msra.mxu0 %v1043
        %1072 = vmatprep.subr.mxu0 0.0
        %1073 = vmatpush1.xpose.msra.mxu0 %v1040
        %1074 = vmatprep.subr.mxu0 0.0
        %1075 = vmatpush1.xpose.msra.mxu0 %v1037
        %1076 = vmatprep.subr.mxu0 0.0
        %1077 = vmatpush1.xpose.msra.mxu0 %v1034
        %1078 = vmatprep.subr.mxu0 0.0
        %1079 = vmatpush1.xpose.msra.mxu0 %v1031
        %1080 = vmatprep.subr.mxu0 0.0
        %1081 = vmatpush1.xpose.msra.mxu0 %v1028
        %1082 = vmatprep.subr.mxu0 0.0
        %1083 = vmatpush1.xpose.msra.mxu0 %v1025
        %1084 = vmatprep.subr.mxu0 0.0
        %1085 = vmatpush1.xpose.msra.mxu0 %v1022
        %1086 = vmatprep.subr.mxu0 0.0
        %1087 = vmatpush1.xpose.msra.mxu0 %v1019
        %1088 = vmatprep.subr.mxu0 0.0
        %1089 = vmatpush1.xpose.msra.mxu0 %v1016
        %1090 = vmatprep.subr.mxu0 0.0
        %1091 = vmatpush1.xpose.msra.mxu0 %v1013
        %1092 = vmatprep.subr.mxu0 0.0
        %1093 = vmatpush2.xpose.msra.mxu0 0.0
        %1094 = vmatprep.subr.mxu0 0.0
        %1095 = vmatpush2.xpose.msra.mxu0 0.0
        %1096 = vmatprep.subr.mxu0 0.0
        %1097 = vmatpush2.xpose.msra.mxu0 0.0
        %1098 = vmatprep.subr.mxu0 0.0
        %1099 = vmatpush2.xpose.msra.mxu0 0.0
        %1100 = vmatprep.subr.mxu0 0.0
        %1101 = vmatpush2.xpose.msra.mxu0 0.0
        %1102 = vmatprep.subr.mxu0 0.0
        %1103 = vmatpush2.xpose.msra.mxu0 0.0
        %1104 = vmatprep.subr.mxu0 0.0
        %1105 = vmatpush2.xpose.msra.mxu0 0.0
        %1106 = vmatprep.subr.mxu0 0.0
        %1107 = vmatpush2.xpose.msra.mxu0 0.0
        %1108 = vmatprep.subr.mxu0 0.0
        %1109 = vmatpush2.xpose.msra.mxu0 0.0
        %1110 = vmatprep.subr.mxu0 0.0
        %1111 = vmatpush2.xpose.msra.mxu0 0.0
        %1112 = vmatprep.subr.mxu0 0.0
        %1113 = vmatpush2.xpose.msra.mxu0 0.0
        %1114 = vmatprep.subr.mxu0 0.0
        %1115 = vmatpush2.xpose.msra.mxu0 0.0
        %1116 = vmatprep.subr.mxu0 0.0
        %1117 = vmatpush2.xpose.msra.mxu0 0.0
        %1118 = vmatprep.subr.mxu0 0.0
        %1119 = vmatpush2.xpose.msra.mxu0 0.0
        %1120 = vmatprep.subr.mxu0 0.0
        %1121 = vmatpush2.xpose.msra.mxu0 0.0
        %1122 = vmatprep.subr.mxu0 0.0
        %1123 = vmatpush2.xpose.msra.mxu0 0.0
        %1124 = vmatprep.mubr.f32.mxu0 0.0
        %1125 = vmatmul.mubr.f32.gmra.mxu0 %v1007
        %v1126 = vpop.f32.mrf.mxu0
        %v1127 = vadd.f32 %v998, %v1126
        %v1128 = vpop.f32.mrf.mxu0
        %1129 = vmatprep.mubr.f32.mxu0 0.0
        %1130 = vmatmul.mubr.f32.gmra.mxu0 %v1010
        %v1131 = vpop.f32.mrf.mxu0
        %v1132 = vadd.f32 %v1003, %v1131
        %v1133 = vpop.f32.mrf.mxu0
        %1134 = vdwg.mxu0
        %v1135 = vsub.f32 0.0, %v1127
        %v1136 = vsub.f32 0.0, %v1132
        %v1137 = vmul.f32 %v1135, 1.442695
        %v1138 = vpow.pop %v1137
        %v1139 = vmul.f32 %v1136, 1.442695
        %v1140 = vpow.pop %v1139
        %v1141 = vadd.f32 %v1138, 1.0
        %v1142 = vadd.f32 %v1140, 1.0
        %v1143 = vrcp.pop %v1141
        %v1144 = vrcp.pop %v1142
        %v1145 = vmul.f32 %v1127, %v1143
        %v1146 = vmul.f32 %v1132, %v1144
        %1147 = vst [vmem:[%s187] sm:$0xff] %v1145
        %1148 = vst [vmem:[%s187 + $0x8] sm:$0xff] %v1146
        %s1149 = sand.u32 %s109, 1
        %s1150 = scalar_lea.sflag [#allocation3], %s1149
        %s1151 = sand.u32 %s109, 1
        %s1152 = smul.addr %s1151, 16
        %s1153 = scalar_lea.vmem [#allocation2], %s1152
        // Predicated region
        $region33: #{tpu_custom_call.1} parent=31 // pred_check
          %p1154 = pneg %p119
        $region34: #{tpu_custom_call.1} parent=31 // pred_check_branch
          %1156 = sbr.rel (%p1154) target = $region36
        $region35: #{tpu_custom_call.1} parent=31 // pred_region
          %s1158 = ssub.s32 256, 256
          %1159 = vsyncadd %s1150, %s1158
          %s1160 = smul.addr %s21, 4
          %s1161 = sadd.s32 %s22, %s1160
          %s1162 = smul.addr %s1161, 128
          %s1163 = scalar_lea.hbm %s3, %s1162
          %s1164 = sshll.u32 %s1153, 4
          %s1165 = int_to_ptr.vmem [resolvable:$true] %s1164
          %1170 = dma.vmem_to_hbm [thread:$0]  %s1165, 256, %s1163, %s1150, 128, 256, 8
        $region36: #{tpu_custom_call.1} parent=31 // pred_fallthru
          _
      $region32: #{tpu_custom_call.1} parent=5 // pred_fallthru
        _
      %p1171 = scmp.le.s32.totalorder 2, %s12
      // Predicated region
      $region37: #{tpu_custom_call.1} parent=5 // pred_check
        %p1172 = pneg %p1171
      $region38: #{tpu_custom_call.1} parent=5 // pred_check_branch
        %1174 = sbr.rel (%p1172) target = $region40
      $region39: #{tpu_custom_call.1} parent=5 // pred_region
        %s1175 = ssub.s32 %s12, 2
        // Predicated region
        $region41: #{tpu_custom_call.1} parent=39 // pred_check
          %p1176 = pneg %p125
        $region42: #{tpu_custom_call.1} parent=39 // pred_check_branch
          %1178 = sbr.rel (%p1176) target = $region44
        $region43: #{tpu_custom_call.1} parent=39 // pred_region
          %s1179 = sand.u32 %s110, 1
          %s1180 = scalar_lea.sflag [#allocation3], %s1179
          %s1181 = sand.u32 %s110, 1
          %s1182 = smul.addr %s1181, 16
          %s1183 = scalar_lea.vmem [#allocation2], %s1182
          %1184 = dma.done %s1180, 256
        $region44: #{tpu_custom_call.1} parent=39 // pred_fallthru
          _
      $region40: #{tpu_custom_call.1} parent=5 // pred_fallthru
        _
    $region6: #{tpu_custom_call.1} parent=1 // loop_footer
      %s16 = sadd.s32 1, %s12
    $region7: #{tpu_custom_call.1} parent=1 // loop_footer_branch
      %11 = sbr.rel target = $region3
    $region8: #{tpu_custom_call.1} parent=1 // loop_exit
      _
    %1185 = vsyncpa [#allocation3], 1
    %s1186 = scalar_lea.sflag [#allocation3], 1
    %1187 = vsyncpa %s1186, 1

</llo_original>
